<compile_context>
chip_gen: v7x
topology: tpu7x:2x2x1
jax: 0.10.0
libtpu: 0.0.40
codegen_flags: <defaults>
</compile_context>

<pallas_src>
import math

import jax
import jax.numpy as jnp
from jax.experimental import pallas as pl
from jax.experimental.pallas import tpu as pltpu

_LANE = 128
_MAX_ROW_TILE = 8192          # 8192 * 128 * 4 B = 4 MiB per f32 buffer
_TARGET_GRID_STEPS = 8        # keep >= ~4 steps per TensorCore on v7x (2 TCs)
_VMEM_LIMIT_BYTES = 32 * 1024 * 1024


def _round_up(x, m):
    return ((x + m - 1) // m) * m


def sin_kernel(a_ref, x_ref, o_ref):
    # a_ref: (B,) f32 scalar-prefetch array (SMEM) -- per-batch modulation scalar.
    # x_ref/o_ref: (1, row_tile, 128) lane-dense tile of one batch element.
    b = pl.program_id(0)
    x = x_ref[...].astype(jnp.float32)           # compute in f32 (v5e: no bf16 VALU)
    o_ref[...] = jnp.sin(a_ref[b] * x).astype(o_ref.dtype)


def _pick_row_tile(rows, batch, sublane):
    """Balanced row tiles, multiple of `sublane`, capped at _MAX_ROW_TILE,
    and split finely enough to give the grid >= _TARGET_GRID_STEPS steps."""
    n_tiles = pl.cdiv(rows, _MAX_ROW_TILE)
    if batch * n_tiles < _TARGET_GRID_STEPS:
        want = pl.cdiv(_TARGET_GRID_STEPS, batch)
        n_tiles = max(n_tiles, min(want, max(1, rows // sublane)))
    row_tile = _round_up(pl.cdiv(rows, n_tiles), sublane)
    return max(sublane, min(row_tile, rows))


def sin_forward(x, codes, weight, agnostic_a, factor):
    """x: (B, ...) array (rank 3 or 4 in the module), codes: (B, code),
    weight: (1, code), agnostic_a: (1,). Returns sin(a_b * x)."""
    orig_shape = x.shape
    B = x.shape[0]
    N = math.prod(x.shape[1:])

    # Per-batch scalar: tiny matmul, done once in XLA outside the kernel.
    a = (agnostic_a.reshape(1, 1) + factor * (codes @ weight.T)).reshape(B)
    a = a.astype(jnp.float32)

    # Lane-dense flattening; pad the per-batch extent to a multiple of
    # sublane*128 so every block is fully (sublane,128)-tileable.
    itemsize = jnp.dtype(x.dtype).itemsize
    sublane = max(8, 32 // itemsize)             # 8 for f32, 16 for bf16, 32 for i8
    N_pad = _round_up(N, sublane * _LANE)
    xf = x.reshape(B, N)
    if N_pad != N:
        xf = jnp.pad(xf, ((0, 0), (0, N_pad - N)))
    rows = N_pad // _LANE
    x3 = xf.reshape(B, rows, _LANE)

    row_tile = _pick_row_tile(rows, B, sublane)
    grid = (B, pl.cdiv(rows, row_tile))

    out3 = pl.pallas_call(
        sin_kernel,
        out_shape=jax.ShapeDtypeStruct(x3.shape, x.dtype),
        grid_spec=pltpu.PrefetchScalarGridSpec(
            num_scalar_prefetch=1,               # `a` lives in SMEM before the grid runs
            grid=grid,
            in_specs=[
                pl.BlockSpec((1, row_tile, _LANE), lambda b, t, a_s: (b, t, 0)),
            ],
            out_specs=pl.BlockSpec((1, row_tile, _LANE), lambda b, t, a_s: (b, t, 0)),
        ),
        compiler_params=pltpu.CompilerParams(
            dimension_semantics=("parallel", "parallel"),
            vmem_limit_bytes=_VMEM_LIMIT_BYTES,
        ),
    )(a, x3)

    out = out3.reshape(B, N_pad)
    if N_pad != N:
        out = out[:, :N]
    return out.reshape(orig_shape)


if __name__ == "__main__":
    # Small shapes consistent with the module: x is 4-D NCHW, codes is (B, code).
    B, C, H, W = 2, 4, 16, 16
    code = 8
    factor = 0.1

    key = jax.random.PRNGKey(0)
    kx, kc, kw = jax.random.split(key, 3)

    x = jax.random.normal(kx, (B, C, H, W), dtype=jnp.float32)
    codes = jax.random.normal(kc, (B, code), dtype=jnp.float32)

    # Deterministic parameter init (mirrors reset_parameters' uniform(-bound, bound)).
    bound = 1.0 / math.sqrt(code)
    weight = jax.random.uniform(kw, (1, code), dtype=jnp.float32,
                                minval=-bound, maxval=bound)
    agnostic_a = jnp.array([1.0], dtype=jnp.float32)  # nn.Parameter(torch.tensor([1.0]))

    out = sin_forward(x, codes, weight, agnostic_a, factor)
    out = jax.block_until_ready(out)

    # Pure-JAX reference for correctness (rank-4 path).
    a_val = agnostic_a + factor * (codes @ weight.T)          # (B, 1)
    ref = jnp.sin(a_val[..., None, None] * x)                 # (B, C, H, W)
    assert out.shape == x.shape and out.dtype == x.dtype
    assert jnp.allclose(out, ref, atol=1e-5, rtol=1e-5)

    # Also exercise the padded path (trailing extent not a multiple of 128) and rank-3.
    x3d = jax.random.normal(kx, (B, 5, 37), dtype=jnp.float32)  # N = 185
    out3d = jax.block_until_ready(
        sin_forward(x3d, codes, weight, agnostic_a, factor))
    ref3d = jnp.sin(a_val[..., None] * x3d)
    assert out3d.shape == x3d.shape and out3d.dtype == x3d.dtype
    assert jnp.allclose(out3d, ref3d, atol=1e-5, rtol=1e-5)

    print("KERNEL_OK")
</pallas_src>

<mosaic_0001>
module attributes {stable_mosaic.version = 11 : i64} {
  func.func @sin_kernel(%arg0: i32, %arg1: i32, %arg2: memref<2xf32, #tpu.memory_space<smem>>, %arg3: memref<1x8x128xf32, #tpu.memory_space<vmem>>, %arg4: memref<1x8x128xf32, #tpu.memory_space<vmem>>) attributes {dimension_semantics = [#tpu.dimension_semantics<parallel>, #tpu.dimension_semantics<parallel>], iteration_bounds = array<i64: 2, 1>, scalar_prefetch = 1 : i64, scratch_operands = 0 : i64, tpu.core_type = #tpu.core_type<tc>, window_params = [{transform_indices = @transform_0, window_bounds = array<i64: 1, 8, 128>}, {transform_indices = @transform_1, window_bounds = array<i64: 1, 8, 128>}]} {
    %c0 = arith.constant 0 : index
    %c0_0 = arith.constant 0 : index
    %c0_1 = arith.constant 0 : index
    %0 = vector.load %arg3[%c0, %c0_0, %c0_1] : memref<1x8x128xf32, #tpu.memory_space<vmem>>, vector<1x8x128xf32>
    %1 = arith.index_cast %arg0 : i32 to index
    %2 = memref.load %arg2[%1] : memref<2xf32, #tpu.memory_space<smem>>
    %3 = vector.broadcast %2 : f32 to vector<1x8x128xf32>
    %4 = arith.mulf %3, %0 : vector<1x8x128xf32>
    %5 = math.sin %4 : vector<1x8x128xf32>
    %c0_2 = arith.constant 0 : index
    %c0_3 = arith.constant 0 : index
    %c0_4 = arith.constant 0 : index
    %6 = vector.load %arg4[%c0_2, %c0_3, %c0_4] : memref<1x8x128xf32, #tpu.memory_space<vmem>>, vector<1x8x128xf32>
    tpu.vector_store %arg4[%c0_2, %c0_3, %c0_4], %5 {strides = array<i32>} : memref<1x8x128xf32, #tpu.memory_space<vmem>>, vector<1x8x128xf32>,
    return
  }
  func.func @transform_0(%arg0: i32, %arg1: i32, %arg2: memref<2xf32, #tpu.memory_space<smem>>) -> (i32, i32, i32) {
    %c0_i32 = arith.constant 0 : i32
    %c0_i32_0 = arith.constant 0 : i32
    return %arg0, %arg1, %c0_i32 : i32, i32, i32
  }
  func.func @transform_1(%arg0: i32, %arg1: i32, %arg2: memref<2xf32, #tpu.memory_space<smem>>) -> (i32, i32, i32) {
    %c0_i32 = arith.constant 0 : i32
    %c0_i32_0 = arith.constant 0 : i32
    return %arg0, %arg1, %c0_i32 : i32, i32, i32
  }
}

</mosaic_0001>

<llo_original>
// kernel: tpu_custom_call.1
$region0: #{tpu_custom_call.1}
  #allocation0 [shape = 'u32[]', space=smem, size = 0x4, offset = 0x4, fixed_abs, tag = 'smem constant byte address 0x4 - core index']
  #allocation1 [shape = 'u32[144,128]{1,0:T(1,128)}', space=vmem, size = 0x12000, scoped, tag = 'internal scratch']
  #allocation2 [shape = 's32[1]{0}', space=sflag, size = 0x4, scoped, tag = 'scoped memory for tpu_custom_call.1']
  #allocation3 [shape = 'u8[512]{0}', space=smem, size = 0x200, scoped, tag = 'prefetched SMEM operand 0']
  %s0 = inlined_call_operand.hbm [shape: f32[2], index: 0, kind: input, shape index: {}]
  %s1 = inlined_call_operand.hbm [shape: f32[2,8,128], index: 1, kind: input, shape index: {}]
  %s2 = inlined_call_operand.hbm [shape: f32[2,8,128], index: 2, kind: output, shape index: {}]
  %s3 = sld [smem:[#allocation0]]
  $region41: #{tpu_custom_call.1} parent=0
    _
  %s5 = ssub.s32 1, %s3
  %s6 = scalar_select 0, %s5, %s3
  %8 = dma.hbm_to_smem %s0, 16, [#allocation3], [#allocation2]
  %9 = dma.done [#allocation2], 16
  %10 = sfence
  $region1: #{tpu_custom_call.1} parent=0
    #allocation4 [shape = 'u8[8192]{0}', space=vmem, size = 0x2000, scoped, tag = 'input window, operand 1']
    #allocation5 [shape = 's32[2]{0}', space=sflag, size = 0x8, scoped, tag = 'scoped memory for tpu_custom_call.1']
    #allocation6 [shape = 's32[2]{0}', space=sflag, size = 0x8, scoped, tag = 'scoped memory for tpu_custom_call.1']
    #allocation7 [shape = 'u8[8192]{0}', space=vmem, size = 0x2000, scoped, tag = 'output window, operand 0']
    %11 = vsyncpa [#allocation5], 0
    %s12 = scalar_lea.sflag [#allocation5], 1
    %13 = vsyncpa %s12, 0
    %14 = vsyncpa [#allocation6], 0
    %s15 = scalar_lea.sflag [#allocation6], 1
    %16 = vsyncpa %s15, 0
    loop: start=0, step=1, limit=4
    $region2: #{tpu_custom_call.1} parent=1 // loop_pre_header
      _
    $region3: #{tpu_custom_call.1} parent=1 // loop_header
      %s18 = sphi 0, %s22
      %p19 = scmp.ge.s32.totalorder %s18, 4
      %s25 = sphi 0, %s37
      %s26 = sphi 0, %s33
      %s27 = sphi 0, %s25
      %s28 = sphi 0, %s26
      %s29 = sphi 0, %s27
      %s30 = sphi 0, %s28
      %s42 = sphi 0, %s44
      %s45 = sphi 0, %s42
      %s46 = sphi 0, %s45
      %s62 = sphi 0, %s46
      %s70 = sphi 0, %s72
      %s73 = sphi 0, %s70
      %s74 = sphi 0, %s73
      %s90 = sphi 0, %s74
    $region4: #{tpu_custom_call.1} parent=1 // loop_header_branch
      %21 = sbr.rel (%p19) target = $region8
    $region5: #{tpu_custom_call.1} parent=1 // loop_body
      %s23 = ssub.s32 %s18, 1
      %s24 = ssub.s32 %s18, 2
      %s31 = sadd.s32 1, %s26
      %p32 = scmp.ge.s32.totalorder %s31, 1
      %s33 = scalar_select %p32, 0, %s31
      %s34 = sadd.s32 1, %s25
      %s35 = scalar_select %p32, %s34, %s25
      %p36 = scmp.ge.s32.totalorder %s35, 2
      %s37 = scalar_select %p36, 0, %s35
      %s38 = ssub.s32 %s25, %s37
      %s39 = ssub.s32 %s26, %s33
      %s40 = sor.u32 %s38, %s39
      %p41 = scmp.eq.s32.totalorder %s40, 0
      %s43 = sadd.s32 %s42, 1
      %s44 = scalar_select %p41, %s42, %s43
      %p47 = pneg %p41
      %p48 = scmp.eq.s32.totalorder %s18, 1
      %p49 = por %p47, %p48
      %p50 = scmp.ne.s32.totalorder %s42, %s45
      %p51 = scmp.eq.s32.totalorder %s18, 0
      %p52 = por %p50, %p51
      %p53 = scmp.ne.s32.totalorder %s42, %s45
      %p54 = scmp.eq.s32.totalorder %s23, 1
      %p55 = por %p53, %p54
      %p56 = scmp.ne.s32.totalorder %s45, %s46
      %p57 = scmp.eq.s32.totalorder %s23, 0
      %p58 = por %p56, %p57
      %p59 = scmp.ne.s32.totalorder %s45, %s46
      %p60 = scmp.eq.s32.totalorder %s24, 1
      %p61 = por %p59, %p60
      %p63 = scmp.ne.s32.totalorder %s46, %s62
      %p64 = scmp.eq.s32.totalorder %s24, 0
      %p65 = por %p63, %p64
      %s66 = ssub.s32 %s25, %s37
      %s67 = ssub.s32 %s26, %s33
      %s68 = sor.u32 %s66, %s67
      %p69 = scmp.eq.s32.totalorder %s68, 0
      %s71 = sadd.s32 %s70, 1
      %s72 = scalar_select %p69, %s70, %s71
      %p75 = pneg %p69
      %p76 = scmp.eq.s32.totalorder %s18, 1
      %p77 = por %p75, %p76
      %p78 = scmp.ne.s32.totalorder %s70, %s73
      %p79 = scmp.eq.s32.totalorder %s18, 0
      %p80 = por %p78, %p79
      %p81 = scmp.ne.s32.totalorder %s70, %s73
      %p82 = scmp.eq.s32.totalorder %s23, 1
      %p83 = por %p81, %p82
      %p84 = scmp.ne.s32.totalorder %s73, %s74
      %p85 = scmp.eq.s32.totalorder %s23, 0
      %p86 = por %p84, %p85
      %p87 = scmp.ne.s32.totalorder %s73, %s74
      %p88 = scmp.eq.s32.totalorder %s24, 1
      %p89 = por %p87, %p88
      %p91 = scmp.ne.s32.totalorder %s74, %s90
      %p92 = scmp.eq.s32.totalorder %s24, 0
      %p93 = por %p91, %p92
      %p94 = scmp.le.s32.totalorder 1, %s18
      %p95 = scmp.lt.s32.totalorder %s18, 3
      %p96 = pnand %p94, %p95
      %p97 = pneg %p96
      // Predicated region
      $region9: #{tpu_custom_call.1} parent=5 // pred_check
        _
      $region10: #{tpu_custom_call.1} parent=5 // pred_check_branch
        %99 = sbr.rel (%p96) target = $region12
      $region11: #{tpu_custom_call.1} parent=5 // pred_region
        %s100 = ssub.s32 %s18, 1
      $region12: #{tpu_custom_call.1} parent=5 // pred_fallthru
        _
      %p101 = scmp.lt.s32.totalorder %s18, 2
      // Predicated region
      $region13: #{tpu_custom_call.1} parent=5 // pred_check
        %p102 = pneg %p101
      $region14: #{tpu_custom_call.1} parent=5 // pred_check_branch
        %104 = sbr.rel (%p102) target = $region16
      $region15: #{tpu_custom_call.1} parent=5 // pred_region
        // Predicated region
        $region17: #{tpu_custom_call.1} parent=15 // pred_check
          %p105 = pneg %p52
        $region18: #{tpu_custom_call.1} parent=15 // pred_check_branch
          %107 = sbr.rel (%p105) target = $region20
        $region19: #{tpu_custom_call.1} parent=15 // pred_region
          %s108 = sand.u32 %s42, 1
          %s109 = scalar_lea.sflag [#allocation5], %s108
          %s110 = sand.u32 %s42, 1
          %s111 = smul.addr %s110, 8
          %s112 = scalar_lea.vmem [#allocation4], %s111
          %s114 = ssub.s32 128, 128
          %115 = vsyncadd %s109, %s114
          %s116 = sadd.s32 %s26, %s25
          %s117 = smul.addr %s116, 128
          %s118 = scalar_lea.hbm %s1, %s117
          %s120 = sshll.u32 %s112, 4
          %s121 = int_to_ptr.vmem [resolvable:$true] %s120
          %123 = dma.hbm_to_vmem [thread:$0]  %s118, 128, %s121, %s109
        $region20: #{tpu_custom_call.1} parent=15 // pred_fallthru
          _
      $region16: #{tpu_custom_call.1} parent=5 // pred_fallthru
        _
      %p124 = scmp.le.s32.totalorder 1, %s18
      %p125 = scmp.lt.s32.totalorder %s18, 3
      %p126 = pnand %p124, %p125
      %p127 = pneg %p126
      // Predicated region
      $region21: #{tpu_custom_call.1} parent=5 // pred_check
        _
      $region22: #{tpu_custom_call.1} parent=5 // pred_check_branch
        %129 = sbr.rel (%p126) target = $region24
      $region23: #{tpu_custom_call.1} parent=5 // pred_region
        %s130 = ssub.s32 %s18, 1
        %s131 = sand.u32 %s45, 1
        %s132 = scalar_lea.sflag [#allocation5], %s131
        %s133 = sand.u32 %s45, 1
        %s134 = smul.addr %s133, 8
        %s135 = scalar_lea.vmem [#allocation4], %s134
        // Predicated region
        $region25: #{tpu_custom_call.1} parent=23 // pred_check
          %p136 = pneg %p58
        $region26: #{tpu_custom_call.1} parent=23 // pred_check_branch
          %138 = sbr.rel (%p136) target = $region28
        $region27: #{tpu_custom_call.1} parent=23 // pred_region
          %139 = dma.done %s132, 128
        $region28: #{tpu_custom_call.1} parent=23 // pred_fallthru
          _
        %s140 = sand.u32 %s45, 1
        %s141 = scalar_lea.sflag [#allocation5], %s140
        %s142 = sand.u32 %s45, 1
        %s143 = smul.addr %s142, 8
        %s144 = scalar_lea.vmem [#allocation4], %s143
        %p145 = pneg %p58
        %p146 = pneg %p55
        %p147 = pneg %p86
        %p148 = pneg %p83
        %s149 = sand.u32 %s73, 1
        %s150 = scalar_lea.sflag [#allocation6], %s149
        %s151 = sand.u32 %s73, 1
        %s152 = smul.addr %s151, 8
        %s153 = scalar_lea.vmem [#allocation7], %s152
        %v154 = vld [vmem:[%s135] sm:$0xff]
        %s155 = sld [smem:[#allocation3 + %s27]]
        %v156 = vstv %s155
        %v157 = vmul.f32 %v156, %v154
        %v158 = vand.u32 2147483647, %v157
        %vm159 = vcmp.le.f32.partialorder %v158, 0.7853982
        %vm160 = vcmp.lt.s32.totalorder %v157, 0
        %v161 = vand.u32 %v157, 2139095040
        %v162 = vshrl.u32 %v161, 23
        %v163 = vsub.s32 %v162, 127
        %v164 = vand.u32 2147483647, %v157
        %v165 = vand.u32 %v164, 8388607
        %v166 = vor.u32 %v165, 8388608
        %v167 = vsub.s32 0, %v166
        %v168 = vadd.s32 %v163, 1
        %vm169 = vcmp.gt.s32.totalorder %v168, 0
        %v170 = vsel %vm169, %v168, 0
        %v171 = vshrl.u32 %v170, 5
        %v172 = vand.u32 %v170, 31
        %v173 = vsub.s32 32, %v172
        %v174 = vshrl.u32 683565275, %v173
        %v175 = vshll.u32 683565275, %v172
        %v176 = vshrl.u32 2475754826, %v173
        %v177 = vor.u32 %v175, %v176
        %v178 = vshll.u32 2475754826, %v172
        %v179 = vshrl.u32 2131351028, %v173
        %v180 = vor.u32 %v178, %v179
        %v181 = vshll.u32 2131351028, %v172
        %v182 = vshrl.u32 2102212464, %v173
        %v183 = vor.u32 %v181, %v182
        %v184 = vshll.u32 2102212464, %v172
        %v185 = vshrl.u32 920167782, %v173
        %v186 = vor.u32 %v184, %v185
        %v187 = vshll.u32 920167782, %v172
        %v188 = vshrl.u32 1326507024, %v173
        %v189 = vor.u32 %v187, %v188
        %vm190 = vcmp.lt.s32.totalorder %v171, 1
        %vm191 = vcmp.lt.s32.totalorder %v171, 2
        %vm192 = vcmp.lt.s32.totalorder %v171, 3
        %vm193 = vcmp.lt.s32.totalorder %v171, 4
        %v194 = vsel %vm190, %v174, %v177
        %v195 = vsel %vm193, %v183, 2102212464
        %v196 = vsel %vm192, %v180, %v195
        %v197 = vsel %vm191, %v194, %v196
        %v198 = vsel %vm190, %v177, %v180
        %v199 = vsel %vm193, %v186, 920167782
        %v200 = vsel %vm192, %v183, %v199
        %v201 = vsel %vm191, %v198, %v200
        %v202 = vsel %vm190, %v180, %v183
        %v203 = vsel %vm193, %v189, 1326507024
        %v204 = vsel %vm192, %v186, %v203
        %v205 = vsel %vm191, %v202, %v204
        %v206 = vshll.u32 %v166, 8
        %v207 = vmul.u32.u64.compose %v206, %v205
        %v208 = vextract.low.u32 %v207
        %v209 = vextract.high.u32 %v207
        %v210 = vmul.u32.u64.compose %v206, %v201
        %v211 = vextract.low.u32 %v210
        %v212 = vextract.high.u32 %v210
        %v213 = vmul.u32 %v206, %v197
        %v214 = vadd.s32 %v209, %v211
        %vm215 = vc.u32 %v209, %v211
        %v216 = vadd.s32 %v212, 1
        %v217 = vsel %vm215, %v216, %v212
        %v218 = vadd.s32 %v213, %v217
        %v219 = vadd.s32 %v218, 536870912
        %v220 = vshrl.u32 %v219, 30
        %v221 = vshll.u32 %v220, 30
        %v222 = vsub.s32 %v218, %v221
        %vm223 = vcmp.lt.s32.totalorder %v222, 0
        %v224 = vsub.s32 0, %v222
        %v225 = vsel %vm223, %v224, %v222
        %v226 = vclz %v225
        %v227 = vsub.s32 %v226, 2
        %vm228 = vcmp.gt.s32.totalorder 0, %v227
        %v229 = vsel %vm228, 0, %v227
        %v230 = vsub.s32 32, %v229
        %v231 = vshll.u32 %v222, %v229
        %v232 = vshrl.u32 %v214, %v230
        %v233 = vor.u32 %v231, %v232
        %v234 = vsub.s32 4294967266, %v229
        %v235 = vadd.s32 %v234, 127
        %v236 = vshll.u32 %v235, 23
        %v237 = vor.u32 4788187, %v236
        %v238 = vand.u32 2147483647, %v237
        %v240 = vcvt.s32.f32 %v233
        %v241 = vmul.f32 %v240, %v238
        %v242 = vxor.u32 %v241, 2147483648
        %v243 = vsel %vm160, %v242, %v241
        %v244 = vsub.s32 4, %v220
        %v245 = vsel %vm160, %v244, %v220
        %v246 = vsel %vm159, %v157, %v243
        %v247 = vsel %vm159, 0, %v245
        %v248 = vcosq.f32.pop %v246
        %v249 = vsinq.f32.pop %v246
        %vm250 = vweird.f32 %v157
        %v251 = vadd.s32 %v247, 3
        %v252 = vand.u32 %v251, 3
        %vm253 = vcmp.lt.s32.totalorder %v252, 2
        %vm254 = vcmp.eq.s32.totalorder %v252, 0
        %v255 = vxor.u32 %v249, 2147483648
        %v256 = vsel %vm254, %v248, %v255
        %vm257 = vcmp.eq.s32.totalorder %v252, 2
        %v258 = vxor.u32 %v248, 2147483648
        %v259 = vsel %vm257, %v258, %v249
        %v260 = vsel %vm253, %v256, %v259
        %v261 = vsel %vm250, nan, %v260
        %262 = vst [vmem:[%s153] sm:$0xff] %v261
        %s263 = sand.u32 %s73, 1
        %s264 = scalar_lea.sflag [#allocation6], %s263
        %s265 = sand.u32 %s73, 1
        %s266 = smul.addr %s265, 8
        %s267 = scalar_lea.vmem [#allocation7], %s266
        // Predicated region
        $region29: #{tpu_custom_call.1} parent=23 // pred_check
          %p268 = pneg %p83
        $region30: #{tpu_custom_call.1} parent=23 // pred_check_branch
          %270 = sbr.rel (%p268) target = $region32
        $region31: #{tpu_custom_call.1} parent=23 // pred_region
          %s272 = ssub.s32 128, 128
          %273 = vsyncadd %s264, %s272
          %s274 = sadd.s32 %s28, %s27
          %s275 = smul.addr %s274, 128
          %s276 = scalar_lea.hbm %s2, %s275
          %s278 = sshll.u32 %s267, 4
          %s279 = int_to_ptr.vmem [resolvable:$true] %s278
          %281 = dma.vmem_to_hbm [thread:$0]  %s279, 128, %s276, %s264
        $region32: #{tpu_custom_call.1} parent=23 // pred_fallthru
          _
      $region24: #{tpu_custom_call.1} parent=5 // pred_fallthru
        _
      %p282 = scmp.le.s32.totalorder 2, %s18
      // Predicated region
      $region33: #{tpu_custom_call.1} parent=5 // pred_check
        %p283 = pneg %p282
      $region34: #{tpu_custom_call.1} parent=5 // pred_check_branch
        %285 = sbr.rel (%p283) target = $region36
      $region35: #{tpu_custom_call.1} parent=5 // pred_region
        %s286 = ssub.s32 %s18, 2
        // Predicated region
        $region37: #{tpu_custom_call.1} parent=35 // pred_check
          %p287 = pneg %p89
        $region38: #{tpu_custom_call.1} parent=35 // pred_check_branch
          %289 = sbr.rel (%p287) target = $region40
        $region39: #{tpu_custom_call.1} parent=35 // pred_region
          %s290 = sand.u32 %s74, 1
          %s291 = scalar_lea.sflag [#allocation6], %s290
          %s292 = sand.u32 %s74, 1
          %s293 = smul.addr %s292, 8
          %s294 = scalar_lea.vmem [#allocation7], %s293
          %295 = dma.done %s291, 128
        $region40: #{tpu_custom_call.1} parent=35 // pred_fallthru
          _
      $region36: #{tpu_custom_call.1} parent=5 // pred_fallthru
        _
    $region6: #{tpu_custom_call.1} parent=1 // loop_footer
      %s22 = sadd.s32 1, %s18
    $region7: #{tpu_custom_call.1} parent=1 // loop_footer_branch
      %17 = sbr.rel target = $region3
    $region8: #{tpu_custom_call.1} parent=1 // loop_exit
      _
    %296 = vsyncpa [#allocation5], 1
    %s297 = scalar_lea.sflag [#allocation5], 1
    %298 = vsyncpa %s297, 1
    %299 = vsyncpa [#allocation6], 1
    %s300 = scalar_lea.sflag [#allocation6], 1
    %301 = vsyncpa %s300, 1

</llo_original>
